<compile_context>
chip_gen: v6e
topology: v6e:2x2x1
jax: 0.10.0
libtpu: 0.0.40
codegen_flags: <defaults>
</compile_context>

<pallas_src>
import functools

import jax
import jax.numpy as jnp
from jax.experimental import pallas as pl
from jax.experimental.pallas import tpu as pltpu

_LANE = 128
# Per-grid-step VMEM budget for (input + output) blocks.  Default 2-deep
# buffering => ~2x this in flight: fits every generation (v7x 64 MiB incl.).
_BLOCK_BUDGET_BYTES = 8 * 1024 * 1024
# Keep tiles at least this many rows (amortize ~0.35 us per-step overhead).
_MIN_TILE_ROWS = 512
# Aim for this many grid steps so both v7x TensorCores get >= 4 steps each.
_TARGET_GRID_STEPS = 8
# Below this element count, plain XLA beats a pallas_call launch.
_XLA_FALLBACK_ELEMENTS = 1 << 20


def _sublane_gran(dtype) -> int:
    # Native second-minor tiling: 8 for 4-byte, 16 for 2-byte, 32 for 1-byte.
    return max(8, 32 // jnp.dtype(dtype).itemsize)


def _scale_kernel(x_ref, o_ref, *, unsigned_fixup: bool):
    # FunctionalModule's functional: x / 255.0  (cast in, scale, cast out).
    if unsigned_fixup:
        # uint8 pixels arrive bit-viewed as int8; recover the unsigned value
        # with a mask on the widened int32 (cheaper than compare/select/add).
        xf = (x_ref[...].astype(jnp.int32) & 0xFF).astype(jnp.float32)
    else:
        xf = x_ref[...].astype(jnp.float32)
    o_ref[...] = (xf * jnp.float32(1.0 / 255.0)).astype(o_ref.dtype)


def functional_module(x: jax.Array, out_dtype=None, *,
                      min_pallas_size: int = _XLA_FALLBACK_ELEMENTS) -> jax.Array:
    """Pallas implementation of FunctionalModule(lambda x: x / 255.0).

    Float inputs preserve dtype by default; raw uint8 pixel tensors default to
    float32 output (matching torch's uint8 / 255.0).  Pass out_dtype=bfloat16
    to halve output HBM traffic when feeding a bf16 model.
    """
    if out_dtype is None:
        out_dtype = x.dtype if jnp.issubdtype(x.dtype, jnp.floating) else jnp.float32
    out_dtype = jnp.dtype(out_dtype)

    orig_shape = x.shape
    total = x.size
    if total == 0:
        return jnp.zeros(orig_shape, out_dtype)

    # Small inputs: pallas_call launch + slab plumbing costs more than the
    # sub-microsecond of HBM traffic; XLA's fused elementwise is strictly better.
    if total < min_pallas_size:
        y = x.astype(jnp.float32) * jnp.float32(1.0 / 255.0)
        return y.astype(out_dtype).reshape(orig_shape)

    # Narrow-read path: view uint8 as int8 (free bitcast), fix range in-kernel.
    unsigned_fixup = x.dtype == jnp.uint8
    if unsigned_fixup:
        x = jax.lax.bitcast_convert_type(x, jnp.int8)
    in_dtype = jnp.dtype(x.dtype)

    # ---- lane-dense, 128-aligned slab (no pad/slice copies when divisible) ----
    n_cols = None
    for cand in (1024, 512, 256, 128):
        if total % cand == 0:
            n_cols = cand
            break
    pad = 0
    if n_cols is None:
        # TODO(synk): ragged total (total % 128 != 0) still pays a pad + slice
        # copy; could instead split a <=127-element tail into a tiny XLA op.
        n_cols = _LANE
        rows = pl.cdiv(total, n_cols)
        pad = rows * n_cols - total
    else:
        rows = total // n_cols

    flat = x.reshape(-1)
    if pad:
        flat = jnp.pad(flat, (0, pad))
    x2d = flat.reshape(rows, n_cols)

    # ---- VMEM-budgeted row tile with grid-depth target ------------------------
    gran = max(_sublane_gran(in_dtype), _sublane_gran(out_dtype))
    bytes_per_row = n_cols * (in_dtype.itemsize + out_dtype.itemsize)

    if rows <= gran:
        tile_m = rows  # full dim -> (8,128) constraint satisfied automatically
    else:
        cap = min(rows, _BLOCK_BUDGET_BYTES // bytes_per_row)
        cap = max(gran, (cap // gran) * gran)
        # Prefer tiles of at least ~512 rows, but never above the VMEM cap.
        pref_min = min(cap, max(gran, (_MIN_TILE_ROWS // gran) * gran))
        # Largest tile that still yields >= _TARGET_GRID_STEPS grid steps.
        tile_for_depth = max(gran, ((rows // _TARGET_GRID_STEPS) // gran) * gran)
        if tile_for_depth >= pref_min:
            tile_m = min(cap, tile_for_depth)
        else:
            tile_m = pref_min
        # Best-effort: even grid length so both v7x TensorCores get equal work.
        n_steps = pl.cdiv(rows, tile_m)
        if n_steps > 1 and n_steps % 2 == 1:
            alt = pl.cdiv(rows, n_steps + 1)
            alt = max(gran, pl.cdiv(alt, gran) * gran)
            if alt <= cap and pl.cdiv(rows, alt) % 2 == 0:
                tile_m = alt

    grid = (pl.cdiv(rows, tile_m),)
    kernel = functools.partial(_scale_kernel, unsigned_fixup=unsigned_fixup)

    out2d = pl.pallas_call(
        kernel,
        out_shape=jax.ShapeDtypeStruct((rows, n_cols), out_dtype),
        grid_spec=pltpu.PrefetchScalarGridSpec(
            num_scalar_prefetch=0,
            grid=grid,
            in_specs=[pl.BlockSpec((tile_m, n_cols), lambda i: (i, 0))],
            out_specs=pl.BlockSpec((tile_m, n_cols), lambda i: (i, 0)),
        ),
        compiler_params=pltpu.CompilerParams(
            dimension_semantics=("parallel",),
            vmem_limit_bytes=32 * 1024 * 1024,
        ),
    )(x2d)

    out_flat = out2d.reshape(-1)
    if pad:
        out_flat = out_flat[:total]
    return out_flat.reshape(orig_shape)


if __name__ == "__main__":
    key = jax.random.PRNGKey(0)
    # Small NCHW video-frame-like input, values in [0, 255] like raw pixels.
    x = jax.random.uniform(
        key, (2, 4, 16, 16), dtype=jnp.float32, minval=0.0, maxval=255.0
    )
    ref = x / 255.0

    # float32 path through the Pallas kernel (force past the small-input gate).
    out = jax.block_until_ready(functional_module(x, min_pallas_size=0))
    assert out.shape == ref.shape and out.dtype == ref.dtype
    assert jnp.allclose(out, ref, atol=1e-6, rtol=1e-6)

    # uint8 raw-pixel path (1 B/elem HBM read, in-kernel bit-level range fixup).
    x_u8 = x.astype(jnp.uint8)
    ref_u8 = x_u8.astype(jnp.float32) / 255.0
    out_u8 = jax.block_until_ready(functional_module(x_u8, min_pallas_size=0))
    assert out_u8.shape == ref_u8.shape and out_u8.dtype == jnp.float32
    assert jnp.allclose(out_u8, ref_u8, atol=1e-6, rtol=1e-6)

    # uint8 -> bf16 output path (halves write traffic for bf16 consumers).
    out_bf16 = jax.block_until_ready(
        functional_module(x_u8, out_dtype=jnp.bfloat16, min_pallas_size=0)
    )
    assert out_bf16.dtype == jnp.bfloat16
    assert jnp.allclose(out_bf16.astype(jnp.float32), ref_u8, atol=1e-2, rtol=1e-2)

    # Default behavior: small inputs short-circuit to XLA (same semantics).
    out_small = jax.block_until_ready(functional_module(x))
    assert out_small.dtype == ref.dtype
    assert jnp.allclose(out_small, ref, atol=1e-6, rtol=1e-6)

    print("KERNEL_OK")
</pallas_src>

<mosaic_0001>
module attributes {stable_mosaic.version = 11 : i64} {
  func.func @_scale_kernel(%arg0: i32, %arg1: memref<2x1024xf32, #tpu.memory_space<vmem>>, %arg2: memref<2x1024xf32, #tpu.memory_space<vmem>>) attributes {dimension_semantics = [#tpu.dimension_semantics<parallel>], iteration_bounds = array<i64: 1>, scalar_prefetch = 0 : i64, scratch_operands = 0 : i64, tpu.core_type = #tpu.core_type<tc>, window_params = [{transform_indices = @transform_0, window_bounds = array<i64: 2, 1024>}, {transform_indices = @transform_1, window_bounds = array<i64: 2, 1024>}]} {
    %c0 = arith.constant 0 : index
    %c0_0 = arith.constant 0 : index
    %0 = vector.load %arg1[%c0, %c0_0] : memref<2x1024xf32, #tpu.memory_space<vmem>>, vector<2x1024xf32>
    %cst = arith.constant 0.00392156886 : f32
    %1 = vector.broadcast %cst : f32 to vector<2x1024xf32>
    %2 = arith.mulf %0, %1 : vector<2x1024xf32>
    %c0_1 = arith.constant 0 : index
    %c0_2 = arith.constant 0 : index
    %3 = vector.load %arg2[%c0_1, %c0_2] : memref<2x1024xf32, #tpu.memory_space<vmem>>, vector<2x1024xf32>
    tpu.vector_store %arg2[%c0_1, %c0_2], %2 {strides = array<i32>} : memref<2x1024xf32, #tpu.memory_space<vmem>>, vector<2x1024xf32>,
    return
  }
  func.func @transform_0(%arg0: i32) -> (i32, i32) {
    %c0_i32 = arith.constant 0 : i32
    %c0_i32_0 = arith.constant 0 : i32
    return %arg0, %c0_i32 : i32, i32
  }
  func.func @transform_1(%arg0: i32) -> (i32, i32) {
    %c0_i32 = arith.constant 0 : i32
    %c0_i32_0 = arith.constant 0 : i32
    return %arg0, %c0_i32 : i32, i32
  }
}

</mosaic_0001>

<llo_original>
// kernel: tpu_custom_call.1
$region0: #{tpu_custom_call.1}
  #allocation0 [shape = 'u32[]', space=smem, size = 0x4, offset = 0x4, fixed_abs, tag = 'smem constant byte address 0x4 - core index']
  #allocation1 [shape = 'u32[144,128]{1,0:T(1,128)}', space=vmem, size = 0x12000, scoped, tag = 'internal scratch']
  %s0 = inlined_call_operand.hbm [shape: f32[2,1024], index: 0, kind: input, shape index: {}]
  %s1 = inlined_call_operand.hbm [shape: f32[2,1024], index: 1, kind: output, shape index: {}]
  %s2 = sld [smem:[#allocation0]]
  $region18: #{tpu_custom_call.1} parent=0
    _
  %s4 = ssub.s32 1, %s2
  %s5 = scalar_select 0, %s4, %s2
  $region1: #{tpu_custom_call.1} parent=0
    #allocation2 [shape = 'u8[8192]{0}', space=vmem, size = 0x2000, scoped, tag = 'input window, operand 0, single buffered']
    #allocation3 [shape = 's32[1]{0}', space=sflag, size = 0x4, scoped, tag = 'scoped memory for tpu_custom_call.1']
    #allocation4 [shape = 's32[1]{0}', space=sflag, size = 0x4, scoped, tag = 'scoped memory for tpu_custom_call.1']
    #allocation5 [shape = 'u8[8192]{0}', space=vmem, size = 0x2000, scoped, tag = 'output window, operand 0, single buffered']
    %6 = vsyncpa [#allocation3], 0
    %7 = vsyncpa [#allocation4], 0
    // Predicated region
    $region2: #{tpu_custom_call.1} parent=1 // pred_check
      _
    $region3: #{tpu_custom_call.1} parent=1 // pred_check_branch
      %9 = sbr.rel (0) target = $region5
    $region4: #{tpu_custom_call.1} parent=1 // pred_region
      %s11 = ssub.s32 256, 256
      %12 = vsyncadd [#allocation3], %s11
      %s14 = sshll.u32 [#allocation2], 4
      %s15 = int_to_ptr.vmem [resolvable:$true] %s14
      %17 = dma.hbm_to_vmem [thread:$0]  %s0, 256, %s15, [#allocation3]
    $region5: #{tpu_custom_call.1} parent=1 // pred_fallthru
      _
    // Predicated region
    $region6: #{tpu_custom_call.1} parent=1 // pred_check
      _
    $region7: #{tpu_custom_call.1} parent=1 // pred_check_branch
      %19 = sbr.rel (0) target = $region9
    $region8: #{tpu_custom_call.1} parent=1 // pred_region
      %20 = dma.done [#allocation3], 256
    $region9: #{tpu_custom_call.1} parent=1 // pred_fallthru
      _
    %v21 = vld [vmem:[#allocation2] sm:$0xff]
    %v22 = vld [vmem:[#allocation2 + $0x8] sm:$0xff]
    %v23 = vmul.f32 %v21, 0.003921569
    %v24 = vmul.f32 %v22, 0.003921569
    %25 = vst [vmem:[#allocation5] sm:$0xff] %v23
    %26 = vst [vmem:[#allocation5 + $0x8] sm:$0xff] %v24
    // Predicated region
    $region10: #{tpu_custom_call.1} parent=1 // pred_check
      _
    $region11: #{tpu_custom_call.1} parent=1 // pred_check_branch
      %28 = sbr.rel (0) target = $region13
    $region12: #{tpu_custom_call.1} parent=1 // pred_region
      %s30 = ssub.s32 256, 256
      %31 = vsyncadd [#allocation4], %s30
      %s33 = sshll.u32 [#allocation5], 4
      %s34 = int_to_ptr.vmem [resolvable:$true] %s33
      %36 = dma.vmem_to_hbm [thread:$0]  %s34, 256, %s1, [#allocation4]
    $region13: #{tpu_custom_call.1} parent=1 // pred_fallthru
      _
    // Predicated region
    $region14: #{tpu_custom_call.1} parent=1 // pred_check
      _
    $region15: #{tpu_custom_call.1} parent=1 // pred_check_branch
      %38 = sbr.rel (0) target = $region17
    $region16: #{tpu_custom_call.1} parent=1 // pred_region
      %39 = dma.done [#allocation4], 256
    $region17: #{tpu_custom_call.1} parent=1 // pred_fallthru
      _
    %40 = vsyncpa [#allocation3], 1
    %41 = vsyncpa [#allocation4], 1

</llo_original>
